<compile_context>
chip_gen: v6e
topology: v6e:2x2x1
jax: 0.10.0
libtpu: 0.0.40
codegen_flags: <defaults>
</compile_context>

<pallas_src>
import jax
import jax.numpy as jnp
from jax.experimental import pallas as pl
from jax.experimental.pallas import tpu as pltpu

PAD_TOKEN = 0  # stands in for vocab.stoi['<pad>'] / padtoken


def _self_attn_kernel(mask_ref, emb_ref, w1_ref, w2_ref, out_ref, alphas_ref):
    # mask_ref:   (Bt, 1, L)        f32   -1e8 at <pad>, 0 elsewhere (lanes = L)
    # emb_ref:    (Bt*L, H2)        bf16  flattened BiLSTM outputs, this tile
    # w1_ref:     (H2, A)           bf16  ws1.weight^T (VMEM-resident)
    # w2_ref:     (A, nhops)        bf16  ws2.weight^T (VMEM-resident)
    # out_ref:    (Bt, 1, nhops*H2) f32   lane-dense flattened bmm(alphas, emb)
    # alphas_ref: (Bt, 1, nhops*L)  f32   lane-dense flattened attention weights
    Bt = out_ref.shape[0]
    L = mask_ref.shape[2]
    nhops = alphas_ref.shape[2] // L
    H2 = out_ref.shape[2] // nhops

    emb2 = emb_ref[...]                                            # (Bt*L, H2) bf16

    # hbar = tanh(drop(emb) @ ws1^T): one MXU matmul with batched M = Bt*L rows,
    # bf16 operands, f32 accumulation (dropout == identity at inference).
    hbar = jnp.tanh(jnp.dot(emb2, w1_ref[...],
                            preferred_element_type=jnp.float32))   # (M, A) f32
    scores = jnp.dot(hbar.astype(jnp.bfloat16), w2_ref[...],
                     preferred_element_type=jnp.float32)           # (M, nhops) f32

    # (M, nhops) -> (Bt, nhops, L) + pad mask.  L % 16 == 0 keeps the split of
    # the row axis aligned with the bf16/f32 sublane tiling.
    logits = (jnp.transpose(scores.reshape(Bt, L, nhops), (0, 2, 1))
              + mask_ref[...])                                     # (Bt, nhops, L)

    # Softmax over the sequence (lane) axis, all Bt*nhops rows at once.
    # Exact normalization: alphas are returned to the caller.
    m = jnp.max(logits, axis=-1, keepdims=True)
    e = jnp.exp(logits - m)
    a = e / jnp.sum(e, axis=-1, keepdims=True)                     # (Bt, nhops, L)

    # out[b] = alphas[b] @ emb[b]: single batched contraction over the tile.
    emb3 = emb2.reshape(Bt, L, H2)                                 # (Bt, L, H2)
    out = jnp.einsum('bnl,blh->bnh', a.astype(jnp.bfloat16), emb3,
                     preferred_element_type=jnp.float32)           # (Bt, nhops, H2)

    # Lane-dense writeback: flatten the (small, static) hop axis into lanes via
    # concatenation so the stores are full-lane rather than masked vst.msk.
    alphas_ref[:, 0, :] = jnp.concatenate(
        [a[:, n, :] for n in range(nhops)], axis=-1)               # (Bt, nhops*L)
    out_ref[:, 0, :] = jnp.concatenate(
        [out[:, n, :] for n in range(nhops)], axis=-1)             # (Bt, nhops*H2)


def _pick_batch_tile(B, L, H2, target_bytes=2 << 20):
    """Batch tile: aim for a ~2 MiB bf16 emb block per grid step, but keep at
    least 2 grid steps (v7x has 2 TensorCores) and divide B exactly."""
    per_seq = L * H2 * 2  # bf16 bytes per sequence
    bt = max(1, min(B, target_bytes // per_seq))
    if B >= 2:
        bt = min(bt, B // 2)          # >= 2 grid steps for megacore sharding
    bt = max(1, bt)
    while B % bt:
        bt -= 1
    return bt


def self_attentive_encoder(inp_ids, emb, ws1_weight, ws2_weight, *,
                           batch_tile=None):
    """inp_ids: (B, L) int; emb: (B, L, H2) float; ws1_weight: (A, H2);
    ws2_weight: (nhops, A).  Returns (out (B,nhops,H2), alphas (B,nhops,L))."""
    B, L, H2 = emb.shape
    A = ws1_weight.shape[0]
    nhops = ws2_weight.shape[0]

    # Pad the sequence axis to a multiple of 16 (bf16 sublane packing) with
    # <pad> tokens; padded positions are masked to -1e8 and contribute nothing.
    Lp = ((L + 15) // 16) * 16
    if Lp != L:
        emb = jnp.pad(emb, ((0, 0), (0, Lp - L), (0, 0)))
        inp_ids = jnp.pad(inp_ids, ((0, 0), (0, Lp - L)),
                          constant_values=PAD_TOKEN)

    Bt = batch_tile if batch_tile is not None else _pick_batch_tile(B, Lp, H2)
    assert B % Bt == 0, "batch tile must divide B"

    # bf16 emb at the boundary (dominant HBM read); flatten to (B*Lp, H2) so the
    # kernel gets one batched-M matmul per grid step (metadata-only reshape).
    emb_flat = jnp.asarray(emb, jnp.bfloat16).reshape(B * Lp, H2)
    w1_t = jnp.asarray(ws1_weight, jnp.bfloat16).T                 # (H2, A)
    w2_t = jnp.asarray(ws2_weight, jnp.bfloat16).T                 # (A, nhops)

    # Lane-major additive pad mask: -1e8 at <pad>, broadcast over hops in-kernel.
    pad_mask = (-100000000.0 *
                (inp_ids == PAD_TOKEN).astype(jnp.float32)).reshape(B, 1, Lp)

    # Explicit VMEM budget: double-buffered per-tile blocks + resident weights,
    # with headroom; capped at 48 MiB (safe on v7x's 64 MiB physical VMEM).
    blk_bytes = (Bt * Lp * H2 * 2 + Bt * Lp * 4
                 + Bt * nhops * H2 * 4 + Bt * nhops * Lp * 4)
    w_bytes = H2 * A * 2 + A * nhops * 2
    vmem_limit = int(min(max(4 * (2 * blk_bytes + 2 * w_bytes), 16 << 20),
                         48 << 20))

    out_flat, alphas_flat = pl.pallas_call(
        _self_attn_kernel,
        out_shape=(
            jax.ShapeDtypeStruct((B, 1, nhops * H2), jnp.float32),
            jax.ShapeDtypeStruct((B, 1, nhops * Lp), jnp.float32),
        ),
        grid_spec=pltpu.PrefetchScalarGridSpec(
            num_scalar_prefetch=0,
            grid=(B // Bt,),
            in_specs=[
                pl.BlockSpec((Bt, 1, Lp), lambda i: (i, 0, 0)),        # pad mask
                pl.BlockSpec((Bt * Lp, H2), lambda i: (i, 0)),         # emb bf16
                pl.BlockSpec((H2, A), lambda i: (0, 0)),               # ws1^T
                pl.BlockSpec((A, nhops), lambda i: (0, 0)),            # ws2^T
            ],
            out_specs=[
                pl.BlockSpec((Bt, 1, nhops * H2), lambda i: (i, 0, 0)),
                pl.BlockSpec((Bt, 1, nhops * Lp), lambda i: (i, 0, 0)),
            ],
        ),
        compiler_params=pltpu.CompilerParams(
            dimension_semantics=("parallel",),
            vmem_limit_bytes=vmem_limit),
    )(pad_mask, emb_flat, w1_t, w2_t)

    # Metadata-only reshapes back to the PyTorch layouts; drop seq padding.
    out = out_flat.reshape(B, nhops, H2)
    alphas = alphas_flat.reshape(B, nhops, Lp)[:, :, :L]
    return out, alphas


def _reference(inp_ids, emb, ws1_weight, ws2_weight):
    B, L, H2 = emb.shape
    nhops = ws2_weight.shape[0]
    hbar = jnp.tanh(emb.reshape(-1, H2) @ ws1_weight.T)
    alphas = (hbar @ ws2_weight.T).reshape(B, L, nhops)
    alphas = jnp.transpose(alphas, (0, 2, 1))                      # (B, nhops, L)
    mask = -100000000.0 * (inp_ids[:, None, :] == PAD_TOKEN).astype(jnp.float32)
    alphas = jax.nn.softmax(alphas + mask, axis=-1)
    out = jnp.einsum("bnl,blh->bnh", alphas, emb)
    return out, alphas


if __name__ == "__main__":
    # config: RNN_nhidden=16 -> H2=32, ATTENTION_nhidden=32, ATTENTION_hops=4
    B, L = 2, 16
    RNN_nhidden = 16
    H2 = 2 * RNN_nhidden
    A = 32
    nhops = 4

    key = jax.random.PRNGKey(0)
    k_emb, k_ids, k_w1, k_w2 = jax.random.split(key, 4)

    emb = jax.random.normal(k_emb, (B, L, H2), dtype=jnp.float32)
    inp_ids = jax.random.randint(k_ids, (B, L), 1, 50, dtype=jnp.int32)
    # force some pad positions to exercise the mask
    inp_ids = inp_ids.at[0, L - 3:].set(PAD_TOKEN)
    inp_ids = inp_ids.at[1, L - 1:].set(PAD_TOKEN)

    # init_weights(): uniform(-0.1, 0.1), Linear(bias=False)
    ws1_weight = jax.random.uniform(k_w1, (A, H2), jnp.float32, -0.1, 0.1)
    ws2_weight = jax.random.uniform(k_w2, (nhops, A), jnp.float32, -0.1, 0.1)

    out, alphas = self_attentive_encoder(inp_ids, emb, ws1_weight, ws2_weight)
    out = jax.block_until_ready(out)
    alphas = jax.block_until_ready(alphas)

    ref_out, ref_alphas = _reference(inp_ids, emb, ws1_weight, ws2_weight)
    assert out.shape == (B, nhops, H2) and alphas.shape == (B, nhops, L)
    # Tolerances relaxed: matmuls/contraction use bf16 MXU operands with f32
    # accumulation (the PyTorch reference is full f32).
    assert jnp.allclose(out, ref_out, atol=2e-2, rtol=2e-2)
    assert jnp.allclose(alphas, ref_alphas, atol=1e-2, rtol=1e-2)

    print("KERNEL_OK")
</pallas_src>

<mosaic_0001>
module attributes {stable_mosaic.version = 11 : i64} {
  func.func @_self_attn_kernel(%arg0: i32, %arg1: memref<1x1x16xf32, #tpu.memory_space<vmem>>, %arg2: memref<16x32xbf16, #tpu.memory_space<vmem>>, %arg3: memref<32x32xbf16, #tpu.memory_space<vmem>>, %arg4: memref<32x4xbf16, #tpu.memory_space<vmem>>, %arg5: memref<1x1x128xf32, #tpu.memory_space<vmem>>, %arg6: memref<1x1x64xf32, #tpu.memory_space<vmem>>) attributes {dimension_semantics = [#tpu.dimension_semantics<parallel>], iteration_bounds = array<i64: 2>, scalar_prefetch = 0 : i64, scratch_operands = 0 : i64, tpu.core_type = #tpu.core_type<tc>, window_params = [{transform_indices = @transform_0, window_bounds = array<i64: 1, 1, 16>}, {transform_indices = @transform_1, window_bounds = array<i64: 16, 32>}, {pipeline_mode = #tpu.pipeline_mode<synchronous>, transform_indices = @transform_2, window_bounds = array<i64: 32, 32>}, {pipeline_mode = #tpu.pipeline_mode<synchronous>, transform_indices = @transform_3, window_bounds = array<i64: 32, 4>}, {transform_indices = @transform_4, window_bounds = array<i64: 1, 1, 128>}, {transform_indices = @transform_5, window_bounds = array<i64: 1, 1, 64>}]} {
    %c0 = arith.constant 0 : index
    %c0_0 = arith.constant 0 : index
    %0 = vector.load %arg2[%c0, %c0_0] : memref<16x32xbf16, #tpu.memory_space<vmem>>, vector<16x32xbf16>
    %c0_1 = arith.constant 0 : index
    %c0_2 = arith.constant 0 : index
    %1 = vector.load %arg3[%c0_1, %c0_2] : memref<32x32xbf16, #tpu.memory_space<vmem>>, vector<32x32xbf16>
    %cst = arith.constant dense<0.000000e+00> : vector<16x32xf32>
    %2 = tpu.matmul %0, %1, %cst {dimension_numbers = #tpu.dot_dimension_numbers<[1], [0], [0], [1], [0, 0, 1, 1], [], []>} : vector<16x32xbf16>, vector<32x32xbf16>, vector<16x32xf32> -> vector<16x32xf32>
    %3 = math.tanh %2 : vector<16x32xf32>
    %4 = arith.truncf %3 : vector<16x32xf32> to vector<16x32xbf16>
    %c0_3 = arith.constant 0 : index
    %c0_4 = arith.constant 0 : index
    %5 = vector.load %arg4[%c0_3, %c0_4] : memref<32x4xbf16, #tpu.memory_space<vmem>>, vector<32x4xbf16>
    %cst_5 = arith.constant dense<0.000000e+00> : vector<16x4xf32>
    %6 = tpu.matmul %4, %5, %cst_5 {dimension_numbers = #tpu.dot_dimension_numbers<[1], [0], [0], [1], [0, 0, 1, 1], [], []>} : vector<16x32xbf16>, vector<32x4xbf16>, vector<16x4xf32> -> vector<16x4xf32>
    %7 = vector.shape_cast %6 : vector<16x4xf32> to vector<1x16x4xf32>
    %8 = tpu.transpose %7, [0, 2, 1] : vector<1x16x4xf32> -> vector<1x4x16xf32>
    %c0_6 = arith.constant 0 : index
    %c0_7 = arith.constant 0 : index
    %c0_8 = arith.constant 0 : index
    %9 = vector.load %arg1[%c0_6, %c0_7, %c0_8] : memref<1x1x16xf32, #tpu.memory_space<vmem>>, vector<1x1x16xf32>
    %10 = vector.broadcast %9 : vector<1x1x16xf32> to vector<1x4x16xf32>
    %11 = arith.addf %8, %10 : vector<1x4x16xf32>
    %cst_9 = arith.constant dense<0xFF800000> : vector<1x4xf32>
    %12 = vector.multi_reduction <maximumf>, %11, %cst_9 [2] : vector<1x4x16xf32> to vector<1x4xf32>
    %13 = vector.shape_cast %12 : vector<1x4xf32> to vector<1x4x1xf32>
    %14 = vector.broadcast %13 : vector<1x4x1xf32> to vector<1x4x16xf32>
    %15 = arith.subf %11, %14 : vector<1x4x16xf32>
    %16 = math.exp %15 : vector<1x4x16xf32>
    %cst_10 = arith.constant dense<0.000000e+00> : vector<1x4xf32>
    %17 = vector.multi_reduction <add>, %16, %cst_10 [2] : vector<1x4x16xf32> to vector<1x4xf32>
    %18 = vector.shape_cast %17 : vector<1x4xf32> to vector<1x4x1xf32>
    %19 = vector.broadcast %18 : vector<1x4x1xf32> to vector<1x4x16xf32>
    %20 = arith.divf %16, %19 : vector<1x4x16xf32>
    %21 = vector.shape_cast %0 : vector<16x32xbf16> to vector<1x16x32xbf16>
    %22 = arith.truncf %20 : vector<1x4x16xf32> to vector<1x4x16xbf16>
    "tpu.trace_start"() <{level = 10 : i32, message = "bnl,blh->bnh"}> : () -> ()
    %cst_11 = arith.constant dense<0.000000e+00> : vector<1x4x32xf32>
    %23 = tpu.matmul %22, %21, %cst_11 {dimension_numbers = #tpu.dot_dimension_numbers<[2], [1], [1], [2], [0, 0, 0, 1, 1, 2], [0], [0]>} : vector<1x4x16xbf16>, vector<1x16x32xbf16>, vector<1x4x32xf32> -> vector<1x4x32xf32>
    "tpu.trace_stop"() : () -> ()
    %24 = vector.extract_strided_slice %20 {offsets = [0, 0, 0], sizes = [1, 1, 16], strides = [1, 1, 1]} : vector<1x4x16xf32> to vector<1x1x16xf32>
    %25 = vector.shape_cast %24 : vector<1x1x16xf32> to vector<1x16xf32>
    %26 = vector.extract_strided_slice %20 {offsets = [0, 1, 0], sizes = [1, 1, 16], strides = [1, 1, 1]} : vector<1x4x16xf32> to vector<1x1x16xf32>
    %27 = vector.shape_cast %26 : vector<1x1x16xf32> to vector<1x16xf32>
    %28 = vector.extract_strided_slice %20 {offsets = [0, 2, 0], sizes = [1, 1, 16], strides = [1, 1, 1]} : vector<1x4x16xf32> to vector<1x1x16xf32>
    %29 = vector.shape_cast %28 : vector<1x1x16xf32> to vector<1x16xf32>
    %30 = vector.extract_strided_slice %20 {offsets = [0, 3, 0], sizes = [1, 1, 16], strides = [1, 1, 1]} : vector<1x4x16xf32> to vector<1x1x16xf32>
    %31 = vector.shape_cast %30 : vector<1x1x16xf32> to vector<1x16xf32>
    %32 = tpu.concatenate %25, %27, %29, %31 in 1 : vector<1x16xf32>, vector<1x16xf32>, vector<1x16xf32>, vector<1x16xf32> -> vector<1x64xf32>
    %c0_12 = arith.constant 0 : index
    %c0_13 = arith.constant 0 : index
    %c0_14 = arith.constant 0 : index
    %33 = vector.load %arg6[%c0_12, %c0_13, %c0_14] : memref<1x1x64xf32, #tpu.memory_space<vmem>>, vector<1x1x64xf32>
    %34 = vector.shape_cast %33 : vector<1x1x64xf32> to vector<1x64xf32>
    %35 = vector.shape_cast %32 : vector<1x64xf32> to vector<1x1x64xf32>
    tpu.vector_store %arg6[%c0_12, %c0_13, %c0_14], %35 {strides = array<i32>} : memref<1x1x64xf32, #tpu.memory_space<vmem>>, vector<1x1x64xf32>,
    %36 = vector.extract_strided_slice %23 {offsets = [0, 0, 0], sizes = [1, 1, 32], strides = [1, 1, 1]} : vector<1x4x32xf32> to vector<1x1x32xf32>
    %37 = vector.shape_cast %36 : vector<1x1x32xf32> to vector<1x32xf32>
    %38 = vector.extract_strided_slice %23 {offsets = [0, 1, 0], sizes = [1, 1, 32], strides = [1, 1, 1]} : vector<1x4x32xf32> to vector<1x1x32xf32>
    %39 = vector.shape_cast %38 : vector<1x1x32xf32> to vector<1x32xf32>
    %40 = vector.extract_strided_slice %23 {offsets = [0, 2, 0], sizes = [1, 1, 32], strides = [1, 1, 1]} : vector<1x4x32xf32> to vector<1x1x32xf32>
    %41 = vector.shape_cast %40 : vector<1x1x32xf32> to vector<1x32xf32>
    %42 = vector.extract_strided_slice %23 {offsets = [0, 3, 0], sizes = [1, 1, 32], strides = [1, 1, 1]} : vector<1x4x32xf32> to vector<1x1x32xf32>
    %43 = vector.shape_cast %42 : vector<1x1x32xf32> to vector<1x32xf32>
    %44 = tpu.concatenate %37, %39, %41, %43 in 1 : vector<1x32xf32>, vector<1x32xf32>, vector<1x32xf32>, vector<1x32xf32> -> vector<1x128xf32>
    %c0_15 = arith.constant 0 : index
    %c0_16 = arith.constant 0 : index
    %c0_17 = arith.constant 0 : index
    %45 = vector.load %arg5[%c0_15, %c0_16, %c0_17] : memref<1x1x128xf32, #tpu.memory_space<vmem>>, vector<1x1x128xf32>
    %46 = vector.shape_cast %45 : vector<1x1x128xf32> to vector<1x128xf32>
    %47 = vector.shape_cast %44 : vector<1x128xf32> to vector<1x1x128xf32>
    tpu.vector_store %arg5[%c0_15, %c0_16, %c0_17], %47 {strides = array<i32>} : memref<1x1x128xf32, #tpu.memory_space<vmem>>, vector<1x1x128xf32>,
    return
  }
  func.func @transform_0(%arg0: i32) -> (i32, i32, i32) {
    %c0_i32 = arith.constant 0 : i32
    %c0_i32_0 = arith.constant 0 : i32
    %c0_i32_1 = arith.constant 0 : i32
    return %arg0, %c0_i32, %c0_i32_0 : i32, i32, i32
  }
  func.func @transform_1(%arg0: i32) -> (i32, i32) {
    %c0_i32 = arith.constant 0 : i32
    %c0_i32_0 = arith.constant 0 : i32
    return %arg0, %c0_i32 : i32, i32
  }
  func.func @transform_2(%arg0: i32) -> (i32, i32) {
    %c0_i32 = arith.constant 0 : i32
    %c0_i32_0 = arith.constant 0 : i32
    %c0_i32_1 = arith.constant 0 : i32
    return %c0_i32, %c0_i32_0 : i32, i32
  }
  func.func @transform_3(%arg0: i32) -> (i32, i32) {
    %c0_i32 = arith.constant 0 : i32
    %c0_i32_0 = arith.constant 0 : i32
    %c0_i32_1 = arith.constant 0 : i32
    return %c0_i32, %c0_i32_0 : i32, i32
  }
  func.func @transform_4(%arg0: i32) -> (i32, i32, i32) {
    %c0_i32 = arith.constant 0 : i32
    %c0_i32_0 = arith.constant 0 : i32
    %c0_i32_1 = arith.constant 0 : i32
    return %arg0, %c0_i32, %c0_i32_0 : i32, i32, i32
  }
  func.func @transform_5(%arg0: i32) -> (i32, i32, i32) {
    %c0_i32 = arith.constant 0 : i32
    %c0_i32_0 = arith.constant 0 : i32
    %c0_i32_1 = arith.constant 0 : i32
    return %arg0, %c0_i32, %c0_i32_0 : i32, i32, i32
  }
}

</mosaic_0001>

<llo_original>
// kernel: tpu_custom_call.1
$region0: #{tpu_custom_call.1}
  #allocation0 [shape = 'u32[]', space=smem, size = 0x4, offset = 0x4, fixed_abs, tag = 'smem constant byte address 0x4 - core index']
  #allocation1 [shape = 'u32[144,128]{1,0:T(1,128)}', space=vmem, size = 0x12000, scoped, tag = 'internal scratch']
  %s0 = inlined_call_operand.vmem [shape: f32[2,1,16], index: 0, kind: input, shape index: {}]
  %s1 = inlined_call_operand.vmem [shape: bf16[32,32], index: 1, kind: input, shape index: {}]
  %s2 = inlined_call_operand.hbm [shape: bf16[32,32], index: 2, kind: input, shape index: {}]
  %s3 = inlined_call_operand.vmem [shape: bf16[32,4], index: 3, kind: input, shape index: {}]
  %s4 = inlined_call_operand.hbm [shape: f32[2,1,128], index: 4, kind: output, shape index: {0}]
  %s5 = inlined_call_operand.hbm [shape: f32[2,1,64], index: 5, kind: output, shape index: {1}]
  %6 = xla_tuple %s4, %s5
  %s7 = sld [smem:[#allocation0]]
  $region61: #{tpu_custom_call.1} parent=0
    _
  %s9 = ssub.s32 1, %s7
  %s10 = scalar_select 0, %s9, %s7
  $region1: #{tpu_custom_call.1} parent=0
    #allocation2 [shape = 'u8[8192]{0}', space=vmem, size = 0x2000, scoped, tag = 'input window, operand 2, single buffered']
    #allocation3 [shape = 's32[2]{0}', space=sflag, size = 0x8, scoped, tag = 'scoped memory for tpu_custom_call.1']
    #allocation4 [shape = 's32[2]{0}', space=sflag, size = 0x8, scoped, tag = 'scoped memory for tpu_custom_call.1']
    #allocation5 [shape = 'u8[1024]{0}', space=vmem, size = 0x400, scoped, tag = 'output window, operand 0']
    #allocation6 [shape = 'u8[1024]{0}', space=vmem, size = 0x400, scoped, tag = 'output window, operand 1']
    #allocation7 [shape = 's32[2]{0}', space=sflag, size = 0x8, scoped, tag = 'scoped memory for tpu_custom_call.1']
    %11 = vsyncpa [#allocation3], 0
    %12 = vsyncpa [#allocation4], 0
    %s13 = scalar_lea.sflag [#allocation4], 1
    %14 = vsyncpa %s13, 0
    %15 = vsyncpa [#allocation7], 0
    %s16 = scalar_lea.sflag [#allocation7], 1
    %17 = vsyncpa %s16, 0
    loop: start=0, step=1, limit=4
    $region2: #{tpu_custom_call.1} parent=1 // loop_pre_header
      _
    $region3: #{tpu_custom_call.1} parent=1 // loop_header
      %s19 = sphi 0, %s23
      %p20 = scmp.ge.s32.totalorder %s19, 4
      %s29 = sphi 0, %s31
      %s32 = sphi 0, %s29
      %s33 = sphi 0, %s32
      %s49 = sphi 0, %s33
      %s55 = sphi 0, %s57
      %s58 = sphi 0, %s55
      %s59 = sphi 0, %s58
      %s75 = sphi 0, %s59
      %s79 = sphi 0, %s79
      %s81 = sphi 0, %s79
      %s82 = sphi 0, %s81
      %s96 = sphi 0, %s82
      %s100 = sphi 0, %s100
      %s102 = sphi 0, %s100
      %s103 = sphi 0, %s102
      %s117 = sphi 0, %s103
      %s123 = sphi 0, %s125
      %s126 = sphi 0, %s123
      %s127 = sphi 0, %s126
      %s143 = sphi 0, %s127
      %s149 = sphi 0, %s151
      %s152 = sphi 0, %s149
      %s153 = sphi 0, %s152
      %s169 = sphi 0, %s153
    $region4: #{tpu_custom_call.1} parent=1 // loop_header_branch
      %22 = sbr.rel (%p20) target = $region8
    $region5: #{tpu_custom_call.1} parent=1 // loop_body
      %s24 = ssub.s32 %s19, 1
      %s25 = ssub.s32 %s19, 2
      %s26 = sadd.s32 %s19, 1
      %s27 = ssub.s32 %s19, %s26
      %p28 = scmp.eq.s32.totalorder %s27, 0
      %s30 = sadd.s32 %s29, 1
      %s31 = scalar_select %p28, %s29, %s30
      %p34 = pneg %p28
      %p35 = scmp.eq.s32.totalorder %s19, 1
      %p36 = por %p34, %p35
      %p37 = scmp.ne.s32.totalorder %s29, %s32
      %p38 = scmp.eq.s32.totalorder %s19, 0
      %p39 = por %p37, %p38
      %p40 = scmp.ne.s32.totalorder %s29, %s32
      %p41 = scmp.eq.s32.totalorder %s24, 1
      %p42 = por %p40, %p41
      %p43 = scmp.ne.s32.totalorder %s32, %s33
      %p44 = scmp.eq.s32.totalorder %s24, 0
      %p45 = por %p43, %p44
      %p46 = scmp.ne.s32.totalorder %s32, %s33
      %p47 = scmp.eq.s32.totalorder %s25, 1
      %p48 = por %p46, %p47
      %p50 = scmp.ne.s32.totalorder %s33, %s49
      %p51 = scmp.eq.s32.totalorder %s25, 0
      %p52 = por %p50, %p51
      %s53 = ssub.s32 %s19, %s26
      %p54 = scmp.eq.s32.totalorder %s53, 0
      %s56 = sadd.s32 %s55, 1
      %s57 = scalar_select %p54, %s55, %s56
      %p60 = pneg %p54
      %p61 = scmp.eq.s32.totalorder %s19, 1
      %p62 = por %p60, %p61
      %p63 = scmp.ne.s32.totalorder %s55, %s58
      %p64 = scmp.eq.s32.totalorder %s19, 0
      %p65 = por %p63, %p64
      %p66 = scmp.ne.s32.totalorder %s55, %s58
      %p67 = scmp.eq.s32.totalorder %s24, 1
      %p68 = por %p66, %p67
      %p69 = scmp.ne.s32.totalorder %s58, %s59
      %p70 = scmp.eq.s32.totalorder %s24, 0
      %p71 = por %p69, %p70
      %p72 = scmp.ne.s32.totalorder %s58, %s59
      %p73 = scmp.eq.s32.totalorder %s25, 1
      %p74 = por %p72, %p73
      %p76 = scmp.ne.s32.totalorder %s59, %s75
      %p77 = scmp.eq.s32.totalorder %s25, 0
      %p78 = por %p76, %p77
      %s80 = sadd.s32 %s79, 1
      %p83 = scmp.eq.s32.totalorder %s19, 1
      %p84 = scmp.ne.s32.totalorder %s79, %s81
      %p85 = scmp.eq.s32.totalorder %s19, 0
      %p86 = por %p84, %p85
      %p87 = scmp.ne.s32.totalorder %s79, %s81
      %p88 = scmp.eq.s32.totalorder %s24, 1
      %p89 = por %p87, %p88
      %p90 = scmp.ne.s32.totalorder %s81, %s82
      %p91 = scmp.eq.s32.totalorder %s24, 0
      %p92 = por %p90, %p91
      %p93 = scmp.ne.s32.totalorder %s81, %s82
      %p94 = scmp.eq.s32.totalorder %s25, 1
      %p95 = por %p93, %p94
      %p97 = scmp.ne.s32.totalorder %s82, %s96
      %p98 = scmp.eq.s32.totalorder %s25, 0
      %p99 = por %p97, %p98
      %s101 = sadd.s32 %s100, 1
      %p104 = scmp.eq.s32.totalorder %s19, 1
      %p105 = scmp.ne.s32.totalorder %s100, %s102
      %p106 = scmp.eq.s32.totalorder %s19, 0
      %p107 = por %p105, %p106
      %p108 = scmp.ne.s32.totalorder %s100, %s102
      %p109 = scmp.eq.s32.totalorder %s24, 1
      %p110 = por %p108, %p109
      %p111 = scmp.ne.s32.totalorder %s102, %s103
      %p112 = scmp.eq.s32.totalorder %s24, 0
      %p113 = por %p111, %p112
      %p114 = scmp.ne.s32.totalorder %s102, %s103
      %p115 = scmp.eq.s32.totalorder %s25, 1
      %p116 = por %p114, %p115
      %p118 = scmp.ne.s32.totalorder %s103, %s117
      %p119 = scmp.eq.s32.totalorder %s25, 0
      %p120 = por %p118, %p119
      %s121 = ssub.s32 %s19, %s26
      %p122 = scmp.eq.s32.totalorder %s121, 0
      %s124 = sadd.s32 %s123, 1
      %s125 = scalar_select %p122, %s123, %s124
      %p128 = pneg %p122
      %p129 = scmp.eq.s32.totalorder %s19, 1
      %p130 = por %p128, %p129
      %p131 = scmp.ne.s32.totalorder %s123, %s126
      %p132 = scmp.eq.s32.totalorder %s19, 0
      %p133 = por %p131, %p132
      %p134 = scmp.ne.s32.totalorder %s123, %s126
      %p135 = scmp.eq.s32.totalorder %s24, 1
      %p136 = por %p134, %p135
      %p137 = scmp.ne.s32.totalorder %s126, %s127
      %p138 = scmp.eq.s32.totalorder %s24, 0
      %p139 = por %p137, %p138
      %p140 = scmp.ne.s32.totalorder %s126, %s127
      %p141 = scmp.eq.s32.totalorder %s25, 1
      %p142 = por %p140, %p141
      %p144 = scmp.ne.s32.totalorder %s127, %s143
      %p145 = scmp.eq.s32.totalorder %s25, 0
      %p146 = por %p144, %p145
      %s147 = ssub.s32 %s19, %s26
      %p148 = scmp.eq.s32.totalorder %s147, 0
      %s150 = sadd.s32 %s149, 1
      %s151 = scalar_select %p148, %s149, %s150
      %p154 = pneg %p148
      %p155 = scmp.eq.s32.totalorder %s19, 1
      %p156 = por %p154, %p155
      %p157 = scmp.ne.s32.totalorder %s149, %s152
      %p158 = scmp.eq.s32.totalorder %s19, 0
      %p159 = por %p157, %p158
      %p160 = scmp.ne.s32.totalorder %s149, %s152
      %p161 = scmp.eq.s32.totalorder %s24, 1
      %p162 = por %p160, %p161
      %p163 = scmp.ne.s32.totalorder %s152, %s153
      %p164 = scmp.eq.s32.totalorder %s24, 0
      %p165 = por %p163, %p164
      %p166 = scmp.ne.s32.totalorder %s152, %s153
      %p167 = scmp.eq.s32.totalorder %s25, 1
      %p168 = por %p166, %p167
      %p170 = scmp.ne.s32.totalorder %s153, %s169
      %p171 = scmp.eq.s32.totalorder %s25, 0
      %p172 = por %p170, %p171
      %p173 = scmp.le.s32.totalorder 1, %s19
      %p174 = scmp.lt.s32.totalorder %s19, 3
      %p175 = pnand %p173, %p174
      %p176 = pneg %p175
      // Predicated region
      $region9: #{tpu_custom_call.1} parent=5 // pred_check
        _
      $region10: #{tpu_custom_call.1} parent=5 // pred_check_branch
        %178 = sbr.rel (%p175) target = $region12
      $region11: #{tpu_custom_call.1} parent=5 // pred_region
        %s179 = ssub.s32 %s19, 1
        // Predicated region
        $region13: #{tpu_custom_call.1} parent=11 // pred_check
          %p180 = pneg %p92
        $region14: #{tpu_custom_call.1} parent=11 // pred_check_branch
          %182 = sbr.rel (%p180) target = $region16
        $region15: #{tpu_custom_call.1} parent=11 // pred_region
          %s184 = ssub.s32 256, 256
          %185 = vsyncadd [#allocation3], %s184
          %s186 = sshll.u32 [#allocation2], 4
          %s187 = int_to_ptr.vmem [resolvable:$true] %s186
          %192 = dma.hbm_to_vmem [thread:$0]  %s2, 256, %s187, [#allocation3], 64, 64, 4
        $region16: #{tpu_custom_call.1} parent=11 // pred_fallthru
          _
        // Predicated region
        $region17: #{tpu_custom_call.1} parent=11 // pred_check
          %p193 = pneg %p113
        $region18: #{tpu_custom_call.1} parent=11 // pred_check_branch
          %195 = sbr.rel (%p193) target = $region20
        $region19: #{tpu_custom_call.1} parent=11 // pred_region
          _
        $region20: #{tpu_custom_call.1} parent=11 // pred_fallthru
          _
      $region12: #{tpu_custom_call.1} parent=5 // pred_fallthru
        _
      %p196 = scmp.lt.s32.totalorder %s19, 2
      // Predicated region
      $region21: #{tpu_custom_call.1} parent=5 // pred_check
        %p197 = pneg %p196
      $region22: #{tpu_custom_call.1} parent=5 // pred_check_branch
        %199 = sbr.rel (%p197) target = $region24
      $region23: #{tpu_custom_call.1} parent=5 // pred_region
        // Predicated region
        $region25: #{tpu_custom_call.1} parent=23 // pred_check
          %p200 = pneg %p39
        $region26: #{tpu_custom_call.1} parent=23 // pred_check_branch
          %202 = sbr.rel (%p200) target = $region28
        $region27: #{tpu_custom_call.1} parent=23 // pred_region
          %p203 = scmp.lt.s32.totalorder %s19, 1
          %s204 = scalar_select %p203, %s19, 1
          %s205 = scalar_lea.vmem %s0, %s204
        $region28: #{tpu_custom_call.1} parent=23 // pred_fallthru
          _
        // Predicated region
        $region29: #{tpu_custom_call.1} parent=23 // pred_check
          %p206 = pneg %p65
        $region30: #{tpu_custom_call.1} parent=23 // pred_check_branch
          %208 = sbr.rel (%p206) target = $region32
        $region31: #{tpu_custom_call.1} parent=23 // pred_region
          %s209 = smul.u32 2, %s19
          %p210 = scmp.lt.s32.totalorder %s209, 3
          %s211 = scalar_select %p210, %s209, 3
          %s212 = smul.addr %s211, 4
          %s213 = scalar_lea.vmem %s1, %s212
          %s214 = smul.u32 2, %s19
        $region32: #{tpu_custom_call.1} parent=23 // pred_fallthru
          _
      $region24: #{tpu_custom_call.1} parent=5 // pred_fallthru
        _
      %p215 = scmp.le.s32.totalorder 1, %s19
      %p216 = scmp.lt.s32.totalorder %s19, 3
      %p217 = pnand %p215, %p216
      %p218 = pneg %p217
      // Predicated region
      $region33: #{tpu_custom_call.1} parent=5 // pred_check
        _
      $region34: #{tpu_custom_call.1} parent=5 // pred_check_branch
        %220 = sbr.rel (%p217) target = $region36
      $region35: #{tpu_custom_call.1} parent=5 // pred_region
        %s221 = ssub.s32 %s19, 1
        // Predicated region
        $region37: #{tpu_custom_call.1} parent=35 // pred_check
          %p222 = pneg %p92
        $region38: #{tpu_custom_call.1} parent=35 // pred_check_branch
          %224 = sbr.rel (%p222) target = $region40
        $region39: #{tpu_custom_call.1} parent=35 // pred_region
          %225 = dma.done [#allocation3], 256
        $region40: #{tpu_custom_call.1} parent=35 // pred_fallthru
          _
        %p226 = scmp.lt.s32.totalorder %s24, 1
        %s227 = scalar_select %p226, %s24, 1
        %s228 = scalar_lea.vmem %s0, %s227
        %p229 = pneg %p45
        %p230 = pneg %p42
        %s231 = smul.u32 2, %s24
        %p232 = scmp.lt.s32.totalorder %s231, 3
        %s233 = scalar_select %p232, %s231, 3
        %s234 = smul.addr %s233, 4
        %s235 = scalar_lea.vmem %s1, %s234
        %p236 = pneg %p71
        %p237 = pneg %p68
        %p238 = pneg %p92
        %p239 = pneg %p89
        %p240 = pneg %p113
        %p241 = pneg %p110
        %p242 = pneg %p139
        %p243 = pneg %p136
        %s244 = sand.u32 %s126, 1
        %s245 = scalar_lea.sflag [#allocation4], %s244
        %s246 = sand.u32 %s126, 1
        %s247 = scalar_lea.vmem [#allocation5], %s246
        %p248 = pneg %p165
        %p249 = pneg %p162
        %s250 = sand.u32 %s152, 1
        %s251 = scalar_lea.sflag [#allocation7], %s250
        %s252 = sand.u32 %s152, 1
        %s253 = scalar_lea.vmem [#allocation6], %s252
        %p254 = scmp.lt.s32.totalorder %s24, 1
        %s255 = scalar_select %p254, %s24, 1
        %s256 = scalar_lea.vmem %s0, %s255
        %s257 = smul.u32 2, %s24
        %p258 = scmp.lt.s32.totalorder %s257, 3
        %s259 = scalar_select %p258, %s257, 3
        %s260 = smul.addr %s259, 4
        %s261 = scalar_lea.vmem %s1, %s260
        %s262 = smul.u32 2, %s24
        %v264 = vld [vmem:[%s261] sm:$0xf]
        %v265 = vld [vmem:[%s261 + $0x4] sm:$0xf]
        %v266 = vld [vmem:[#allocation2] sm:$0xf]
        %v267 = vld [vmem:[#allocation2 + $0x4] sm:$0xf]
        %v268 = vld [vmem:[#allocation2 + $0x8] sm:$0xf]
        %v269 = vld [vmem:[#allocation2 + $0xc] sm:$0xf]
        %v272 = vunpack.c.l.b16 %v264
        %v273 = vunpack.c.l.b16 %v265
        %v274 = vpack.c.b16 %v273, %v272
        %v279 = vunpack.c.l.b16 %v266
        %v280 = vunpack.c.l.b16 %v267
        %v281 = vunpack.c.l.b16 %v268
        %v282 = vunpack.c.l.b16 %v269
        %v283 = vpack.c.b16 %v280, %v279
        %v284 = vpack.c.b16 %v282, %v281
        %vm287 = vcmask 261120
        %v289 = vsel %vm287, %v274, 0
        %291 = vmatprep.subr.bf16.mxu0 0
        %292 = vmatpush1.bf16.msra.mxu0 0
        %293 = vmatprep.subr.bf16.mxu0 0
        %294 = vmatpush1.bf16.msra.mxu0 0
        %295 = vmatprep.subr.bf16.mxu0 0
        %296 = vmatpush1.bf16.msra.mxu0 0
        %297 = vmatprep.subr.bf16.mxu0 0
        %298 = vmatpush1.bf16.msra.mxu0 0
        %299 = vmatprep.subr.bf16.mxu0 0
        %300 = vmatpush1.bf16.msra.mxu0 0
        %301 = vmatprep.subr.bf16.mxu0 0
        %302 = vmatpush1.bf16.msra.mxu0 0
        %303 = vmatprep.subr.bf16.mxu0 0
        %304 = vmatpush1.bf16.msra.mxu0 %v284
        %305 = vmatprep.subr.bf16.mxu0 0
        %306 = vmatpush1.bf16.msra.mxu0 %v283
        %307 = vmatprep.subr.bf16.mxu0 0
        %308 = vmatpush2.bf16.msra.mxu0 0
        %309 = vmatprep.subr.bf16.mxu0 0
        %310 = vmatpush2.bf16.msra.mxu0 0
        %311 = vmatprep.subr.bf16.mxu0 0
        %312 = vmatpush2.bf16.msra.mxu0 0
        %313 = vmatprep.subr.bf16.mxu0 0
        %314 = vmatpush2.bf16.msra.mxu0 0
        %315 = vmatprep.subr.bf16.mxu0 0
        %316 = vmatpush2.bf16.msra.mxu0 0
        %317 = vmatprep.subr.bf16.mxu0 0
        %318 = vmatpush2.bf16.msra.mxu0 0
        %319 = vmatprep.subr.bf16.mxu0 0
        %320 = vmatpush2.bf16.msra.mxu0 0
        %321 = vmatprep.subr.bf16.mxu0 0
        %322 = vmatpush2.bf16.msra.mxu0 0
        %323 = vmatprep.mubr.bf16.mxu0 0
        %324 = vmatmul.mubr.bf16.gmra.mxu0 %v289
        %v325 = vpop.f32.mrf.mxu0
        %v326 = vadd.f32 0.0, %v325
        %v327 = vpop.f32.mrf.mxu0
        %v328 = vpop.f32.mrf.mxu0
        %v329 = vadd.f32 0.0, %v328
        %v330 = vpop.f32.mrf.mxu0
        %331 = vdwg.mxu0
        %v332 = vtanh.pop %v326
        %v333 = vtanh.pop %v329
        %v334 = vpack.c.bf16 %v333, %v332
        %v335 = vld [vmem:[%s3] sm:$0xf]
        %v336 = vld [vmem:[%s3 + $0x4] sm:$0xf]
        %v337 = vld [vmem:[%s3 + $0x8] sm:$0xf]
        %v338 = vld [vmem:[%s3 + $0xc] sm:$0xf]
        %v343 = vunpack.c.l.b16 %v335
        %v344 = vunpack.c.l.b16 %v336
        %v345 = vunpack.c.l.b16 %v337
        %v346 = vunpack.c.l.b16 %v338
        %v347 = vpack.c.b16 %v344, %v343
        %v348 = vpack.c.b16 %v346, %v345
        %v352 = vsel %vm287, %v334, 0
        %354 = vmatprep.subr.bf16.mxu0 0
        %355 = vmatpush1.bf16.msra.mxu0 0
        %356 = vmatprep.subr.bf16.mxu0 0
        %357 = vmatpush1.bf16.msra.mxu0 0
        %358 = vmatprep.subr.bf16.mxu0 0
        %359 = vmatpush1.bf16.msra.mxu0 0
        %360 = vmatprep.subr.bf16.mxu0 0
        %361 = vmatpush1.bf16.msra.mxu0 0
        %362 = vmatprep.subr.bf16.mxu0 0
        %363 = vmatpush1.bf16.msra.mxu0 0
        %364 = vmatprep.subr.bf16.mxu0 0
        %365 = vmatpush1.bf16.msra.mxu0 0
        %366 = vmatprep.subr.bf16.mxu0 0
        %367 = vmatpush1.bf16.msra.mxu0 %v348
        %368 = vmatprep.subr.bf16.mxu0 0
        %369 = vmatpush1.bf16.msra.mxu0 %v347
        %370 = vmatprep.subr.bf16.mxu0 0
        %371 = vmatpush2.bf16.msra.mxu0 0
        %372 = vmatprep.subr.bf16.mxu0 0
        %373 = vmatpush2.bf16.msra.mxu0 0
        %374 = vmatprep.subr.bf16.mxu0 0
        %375 = vmatpush2.bf16.msra.mxu0 0
        %376 = vmatprep.subr.bf16.mxu0 0
        %377 = vmatpush2.bf16.msra.mxu0 0
        %378 = vmatprep.subr.bf16.mxu0 0
        %379 = vmatpush2.bf16.msra.mxu0 0
        %380 = vmatprep.subr.bf16.mxu0 0
        %381 = vmatpush2.bf16.msra.mxu0 0
        %382 = vmatprep.subr.bf16.mxu0 0
        %383 = vmatpush2.bf16.msra.mxu0 0
        %384 = vmatprep.subr.bf16.mxu0 0
        %385 = vmatpush2.bf16.msra.mxu0 0
        %386 = vmatprep.mubr.bf16.mxu0 0
        %387 = vmatmul.mubr.bf16.gmra.mxu0 %v352
        %v388 = vpop.f32.mrf.mxu0
        %v389 = vadd.f32 0.0, %v388
        %v390 = vpop.f32.mrf.mxu0
        %v391 = vpop.f32.mrf.mxu0
        %v392 = vadd.f32 0.0, %v391
        %v393 = vpop.f32.mrf.mxu0
        %394 = vdwg.mxu0
        %395 = vxpose.xlu0.b32.start [1/16] %v389, 128
        %396 = vxpose.xlu0.b32.cont [2/16] %v392, 128
        %397 = vxpose.xlu0.b32.cont [3/16] 0.0, 128
        %398 = vxpose.xlu0.b32.cont [4/16] 0.0, 128
        %399 = vxpose.xlu0.b32.cont [5/16] 0.0, 128
        %400 = vxpose.xlu0.b32.cont [6/16] 0.0, 128
        %401 = vxpose.xlu0.b32.cont [7/16] 0.0, 128
        %402 = vxpose.xlu0.b32.cont [8/16] 0.0, 128
        %403 = vxpose.xlu0.b32.cont [9/16] 0.0, 128
        %404 = vxpose.xlu0.b32.cont [10/16] 0.0, 128
        %405 = vxpose.xlu0.b32.cont [11/16] 0.0, 128
        %406 = vxpose.xlu0.b32.cont [12/16] 0.0, 128
        %407 = vxpose.xlu0.b32.cont [13/16] 0.0, 128
        %408 = vxpose.xlu0.b32.cont [14/16] 0.0, 128
        %409 = vxpose.xlu0.b32.cont [15/16] 0.0, 128
        %410 = vxpose.xlu0.b32.end [16/16] 0.0, 128
        %v411 = vpop.trf.xlu0
        %v412 = vpop.trf.xlu0
        %v413 = vpop.trf.xlu0
        %v414 = vpop.trf.xlu0
        %v415 = vpop.trf.xlu0
        %v416 = vpop.trf.xlu0
        %v417 = vpop.trf.xlu0
        %v418 = vpop.trf.xlu0
        %v419 = vpop.trf.xlu0
        %v420 = vpop.trf.xlu0
        %v421 = vpop.trf.xlu0
        %v422 = vpop.trf.xlu0
        %v423 = vpop.trf.xlu0
        %v424 = vpop.trf.xlu0
        %v425 = vpop.trf.xlu0
        %v426 = vpop.trf.xlu0
        %v427 = vld [vmem:[%s256] sm:$0x1]
        %v429 = vlaneseq
        %v430 = vshrl.u32 %v429, 7
        %v431 = vsub.s32 0, %v430
        %v432 = vrot.slane %v427, %v431
        %v434 = vadd.f32 %v411, %v432
        %vm435 = vcmask 125952
        %v436 = vsel %vm435, %v434, -inf
        %437 = vmax.xlane.f32.xlu0 %v436
        %v438 = vpop.xlane.xlu0 %437
        %v439 = vsub.f32 %v434, %v438
        %v440 = vmul.f32 %v439, 1.442695
        %v441 = vpow.pop %v440
        %v442 = vsel %vm435, %v441, 0.0
        %443 = vadd.xlane.f32.xlu0 %v442
        %v444 = vpop.xlane.xlu0 %443
        %v445 = vrcp.pop %v444
        %v446 = vmul.f32 %v441, %v445
        %v447 = vpack.c.bf16 %v446, %v446
        %vm449 = vcmask 130048
        %v451 = vsel %vm449, %v447, 0
        %453 = vmatprep.subr.bf16.mxu0 0
        %454 = vmatpush1.bf16.msra.mxu0 0
        %455 = vmatprep.subr.bf16.mxu0 0
        %456 = vmatpush1.bf16.msra.mxu0 0
        %457 = vmatprep.subr.bf16.mxu0 0
        %458 = vmatpush1.bf16.msra.mxu0 0
        %459 = vmatprep.subr.bf16.mxu0 0
        %460 = vmatpush1.bf16.msra.mxu0 0
        %461 = vmatprep.subr.bf16.mxu0 0
        %462 = vmatpush1.bf16.msra.mxu0 0
        %463 = vmatprep.subr.bf16.mxu0 0
        %464 = vmatpush1.bf16.msra.mxu0 0
        %465 = vmatprep.subr.bf16.mxu0 0
        %466 = vmatpush1.bf16.msra.mxu0 0
        %467 = vmatprep.subr.bf16.mxu0 0
        %468 = vmatpush1.bf16.msra.mxu0 %v274
        %469 = vmatprep.subr.bf16.mxu0 0
        %470 = vmatpush2.bf16.msra.mxu0 0
        %471 = vmatprep.subr.bf16.mxu0 0
        %472 = vmatpush2.bf16.msra.mxu0 0
        %473 = vmatprep.subr.bf16.mxu0 0
        %474 = vmatpush2.bf16.msra.mxu0 0
        %475 = vmatprep.subr.bf16.mxu0 0
        %476 = vmatpush2.bf16.msra.mxu0 0
        %477 = vmatprep.subr.bf16.mxu0 0
        %478 = vmatpush2.bf16.msra.mxu0 0
        %479 = vmatprep.subr.bf16.mxu0 0
        %480 = vmatpush2.bf16.msra.mxu0 0
        %481 = vmatprep.subr.bf16.mxu0 0
        %482 = vmatpush2.bf16.msra.mxu0 0
        %483 = vmatprep.subr.bf16.mxu0 0
        %484 = vmatpush2.bf16.msra.mxu0 0
        %485 = vmatprep.mubr.bf16.mxu0 0
        %486 = vmatmul.mubr.bf16.gmra.mxu0 %v451
        %v487 = vpop.f32.mrf.mxu0
        %v488 = vadd.f32 0.0, %v487
        %v489 = vpop.f32.mrf.mxu0
        %v490 = vpop.f32.mrf.mxu0
        %v491 = vpop.f32.mrf.mxu0
        %492 = vdwg.mxu0
        %v494 = vrot.slane %v446, 1
        %495 = vrot.lane.b32.xlu0 %v494, 16
        %v496 = vpop.permute.xlu0 %495
        %v498 = vrot.slane %v446, 2
        %499 = vrot.lane.b32.xlu0 %v498, 32
        %v500 = vpop.permute.xlu0 %499
        %v502 = vrot.slane %v446, 3
        %503 = vrot.lane.b32.xlu0 %v502, 48
        %v504 = vpop.permute.xlu0 %503
        %v506 = vsel %vm449, %v446, %v496
        %v507 = vsel %vm287, %v506, %v500
        %vm508 = vcmask 392192
        %v509 = vsel %vm508, %v507, %v504
        %vm510 = vcmask 516096
        %511 = vst.msk [vmem:[%s253] sm:$0x1] %vm510, %v509
        %v513 = vrot.slane %v488, 1
        %514 = vrot.lane.b32.xlu0 %v513, 32
        %v515 = vpop.permute.xlu0 %514
        %v517 = vrot.slane %v488, 2
        %518 = vrot.lane.b32.xlu0 %v517, 64
        %v519 = vpop.permute.xlu0 %518
        %v521 = vrot.slane %v488, 3
        %522 = vrot.lane.b32.xlu0 %v521, 96
        %v523 = vpop.permute.xlu0 %522
        %v525 = vsel %vm287, %v488, %v515
        %vm526 = vcmask 523264
        %v527 = vsel %vm526, %v525, %v519
        %vm528 = vcmask 785408
        %v529 = vsel %vm528, %v527, %v523
        %530 = vst [vmem:[%s247] sm:$0x1] %v529
        %s531 = sand.u32 %s126, 1
        %s532 = scalar_lea.sflag [#allocation4], %s531
        %s533 = sand.u32 %s126, 1
        %s534 = scalar_lea.vmem [#allocation5], %s533
        %s535 = sand.u32 %s152, 1
        %s536 = scalar_lea.sflag [#allocation7], %s535
        %s537 = sand.u32 %s152, 1
        %s538 = scalar_lea.vmem [#allocation6], %s537
        // Predicated region
        $region41: #{tpu_custom_call.1} parent=35 // pred_check
          %p539 = pneg %p136
        $region42: #{tpu_custom_call.1} parent=35 // pred_check_branch
          %541 = sbr.rel (%p539) target = $region44
        $region43: #{tpu_custom_call.1} parent=35 // pred_region
          %s543 = ssub.s32 16, 16
          %544 = vsyncadd %s532, %s543
          %s545 = smul.addr %s24, 16
          %s546 = scalar_lea.hbm %s4, %s545
          %s548 = sshll.u32 %s534, 4
          %s549 = int_to_ptr.vmem [resolvable:$true] %s548
          %551 = dma.vmem_to_hbm [thread:$0]  %s549, 16, %s546, %s532
        $region44: #{tpu_custom_call.1} parent=35 // pred_fallthru
          _
        // Predicated region
        $region45: #{tpu_custom_call.1} parent=35 // pred_check
          %p552 = pneg %p162
        $region46: #{tpu_custom_call.1} parent=35 // pred_check_branch
          %554 = sbr.rel (%p552) target = $region48
        $region47: #{tpu_custom_call.1} parent=35 // pred_region
          %s556 = ssub.s32 16, 16
          %557 = vsyncadd %s536, %s556
          %s558 = smul.addr %s24, 16
          %s559 = scalar_lea.hbm %s5, %s558
          %s561 = sshll.u32 %s538, 4
          %s562 = int_to_ptr.vmem [resolvable:$true] %s561
          %564 = dma.vmem_to_hbm [thread:$0]  %s562, 16, %s559, %s536
        $region48: #{tpu_custom_call.1} parent=35 // pred_fallthru
          _
      $region36: #{tpu_custom_call.1} parent=5 // pred_fallthru
        _
      %p565 = scmp.le.s32.totalorder 2, %s19
      // Predicated region
      $region49: #{tpu_custom_call.1} parent=5 // pred_check
        %p566 = pneg %p565
      $region50: #{tpu_custom_call.1} parent=5 // pred_check_branch
        %568 = sbr.rel (%p566) target = $region52
      $region51: #{tpu_custom_call.1} parent=5 // pred_region
        %s569 = ssub.s32 %s19, 2
        // Predicated region
        $region53: #{tpu_custom_call.1} parent=51 // pred_check
          %p570 = pneg %p142
        $region54: #{tpu_custom_call.1} parent=51 // pred_check_branch
          %572 = sbr.rel (%p570) target = $region56
        $region55: #{tpu_custom_call.1} parent=51 // pred_region
          %s573 = sand.u32 %s127, 1
          %s574 = scalar_lea.sflag [#allocation4], %s573
          %s575 = sand.u32 %s127, 1
          %s576 = scalar_lea.vmem [#allocation5], %s575
          %577 = dma.done %s574, 16
        $region56: #{tpu_custom_call.1} parent=51 // pred_fallthru
          _
        // Predicated region
        $region57: #{tpu_custom_call.1} parent=51 // pred_check
          %p578 = pneg %p168
        $region58: #{tpu_custom_call.1} parent=51 // pred_check_branch
          %580 = sbr.rel (%p578) target = $region60
        $region59: #{tpu_custom_call.1} parent=51 // pred_region
          %s581 = sand.u32 %s153, 1
          %s582 = scalar_lea.sflag [#allocation7], %s581
          %s583 = sand.u32 %s153, 1
          %s584 = scalar_lea.vmem [#allocation6], %s583
          %585 = dma.done %s582, 16
        $region60: #{tpu_custom_call.1} parent=51 // pred_fallthru
          _
      $region52: #{tpu_custom_call.1} parent=5 // pred_fallthru
        _
    $region6: #{tpu_custom_call.1} parent=1 // loop_footer
      %s23 = sadd.s32 1, %s19
    $region7: #{tpu_custom_call.1} parent=1 // loop_footer_branch
      %18 = sbr.rel target = $region3
    $region8: #{tpu_custom_call.1} parent=1 // loop_exit
      _
    %586 = vsyncpa [#allocation3], 1
    %s587 = scalar_lea.sflag [#allocation3], 1
    %588 = vsyncpa %s587, 1
    %589 = vsyncpa [#allocation4], 1
    %s590 = scalar_lea.sflag [#allocation4], 1
    %591 = vsyncpa %s590, 1
    %592 = vsyncpa [#allocation7], 1
    %s593 = scalar_lea.sflag [#allocation7], 1
    %594 = vsyncpa %s593, 1

</llo_original>
